<compile_context>
chip_gen: v7x
topology: tpu7x:2x2x1
jax: 0.10.0
libtpu: 0.0.40
codegen_flags: <defaults>
</compile_context>

<pallas_src>
import functools

import jax
import jax.numpy as jnp
from jax.experimental import pallas as pl
from jax.experimental.pallas import tpu as pltpu


def _round_up(x, m):
    return ((x + m - 1) // m) * m


def _tv_loss_kernel(x_ref, mask_ref, out_ref, *, W, LP, accumulate):
    # x_ref:    (TC, LP)  -- TC whole channels of one image, spatial dims
    #                        flattened (and zero-padded) into the lane dim.
    # mask_ref: (2, LP)   -- row 0: W-diff validity, row 1: H-diff validity
    #                        (f32 0/1), resident across all grid steps.
    # out_ref:  (1, 128)  -- per-image (or per-tile) scalar, lane-broadcast.
    x = x_ref[...].astype(jnp.float32)          # cast once, before differencing

    # Shifted views via XLU rolls (np.roll semantics; positive axis required):
    #   x_r1[i] = x[(i + 1) % LP]   (next pixel along W)
    #   x_rW[i] = x[(i + W) % LP]   (next pixel along H)
    x_r1 = pltpu.roll(x, shift=LP - 1, axis=1)
    x_rW = x if LP == W else pltpu.roll(x, shift=LP - W, axis=1)

    dw = x - x_r1
    dh = x - x_rW

    m = mask_ref[...]
    sq = dw * dw * m[0:1, :] + dh * dh * m[1:2, :]

    s = jnp.full((1, 128), jnp.sum(sq), dtype=out_ref.dtype)
    if accumulate:
        @pl.when(pl.program_id(1) == 0)
        def _():
            out_ref[...] = jnp.zeros_like(out_ref)
        out_ref[...] += s
    else:
        out_ref[...] = s


def tv_loss(img, tv_weight=1.0):
    """Pallas TV loss. img: (N, C, H, W) array -> (N,) float32 per-image loss."""
    N, C, H, W = img.shape
    HW = H * W
    LP = _round_up(HW, 128)                     # lane-dense, 128-aligned spatial dim
    itemsize = jnp.dtype(img.dtype).itemsize

    # Generation-aware VMEM budgets (v7x: 64 MiB physical; v5e/v6e: 128 MiB).
    block_budget = 4 * 1024 * 1024
    vmem_limit = 48 * 1024 * 1024
    try:                                        # best effort; v7x-safe fallback
        if int(pltpu.get_tpu_info().vmem_capacity_bytes) >= 96 * 1024 * 1024:
            block_budget, vmem_limit = 8 * 1024 * 1024, 96 * 1024 * 1024
    except Exception:
        pass

    x = img.reshape(N, C, HW)
    if LP != HW:                                # lane padding; masked out in-kernel
        x = jnp.pad(x, ((0, 0), (0, 0), (0, LP - HW)))

    # Channel tile: biggest tile within the per-buffer budget, sublane aligned.
    sub = max(8, 32 // itemsize)                # 8 (f32) / 16 (bf16) / 32 (int8)
    tc_cap = block_budget // (LP * itemsize)
    if tc_cap >= C:
        TC = C                                  # whole image per block (RGB case)
    elif tc_cap >= sub:
        TC = (tc_cap // sub) * sub              # clamped to the budget (bug fix)
    else:
        # A single sublane-group of channels already exceeds the budget.
        # TODO(synk): spatial (H) tiling with a one-row halo for such images.
        TC = min(C, sub)
        vmem_limit = min(
            max(vmem_limit, 2 * TC * LP * itemsize + 6 * TC * LP * 4 + (8 << 20)),
            112 * 1024 * 1024,
        )
    Cp = _round_up(C, TC)
    if Cp != C:                                 # all-zero channels contribute 0
        x = jnp.pad(x, ((0, 0), (0, Cp - C), (0, 0)))
    nct = Cp // TC

    # Precomputed neighbour-validity masks (built once, resident in VMEM).
    col = jnp.arange(LP, dtype=jnp.int32)
    valid_w = jnp.logical_and((col % W) < (W - 1), col < HW)
    valid_h = col < (H - 1) * W
    masks = jnp.stack([valid_w, valid_h], axis=0).astype(jnp.float32)   # (2, LP)

    # N==1 with several channel tiles: per-tile partials, both axes parallel
    # (keeps both v7x TensorCores busy).  Otherwise accumulate in-kernel.
    parallel_c = (N == 1) and (nct > 1)
    K = nct if parallel_c else 1
    out_index = (lambda n, c: (n, c, 0, 0)) if parallel_c else (lambda n, c: (n, 0, 0, 0))
    dims = ("parallel", "parallel") if parallel_c else ("parallel", "arbitrary")

    kernel = functools.partial(_tv_loss_kernel, W=W, LP=LP, accumulate=not parallel_c)

    out = pl.pallas_call(
        kernel,
        out_shape=jax.ShapeDtypeStruct((N, K, 1, 128), jnp.float32),
        grid_spec=pltpu.PrefetchScalarGridSpec(
            num_scalar_prefetch=0,
            grid=(N, nct),
            in_specs=[
                pl.BlockSpec((None, TC, LP), lambda n, c: (n, c, 0)),
                pl.BlockSpec((2, LP), lambda n, c: (0, 0)),        # resident masks
            ],
            out_specs=pl.BlockSpec((None, None, 1, 128), out_index),
        ),
        compiler_params=pltpu.CompilerParams(
            dimension_semantics=dims,
            vmem_limit_bytes=vmem_limit,
        ),
    )(x, masks)

    # tv_weight applied outside the kernel -> changing it never recompiles.
    return tv_weight * jnp.sum(out[:, :, 0, 0], axis=1)


def tv_loss_ref(img, tv_weight=1.0):
    img = img.astype(jnp.float32)
    w_var = jnp.sum(jnp.square(img[:, :, :, :-1] - img[:, :, :, 1:]), axis=(1, 2, 3))
    h_var = jnp.sum(jnp.square(img[:, :, :-1, :] - img[:, :, 1:, :]), axis=(1, 2, 3))
    return tv_weight * (h_var + w_var)


if __name__ == "__main__":
    key = jax.random.PRNGKey(0)
    k1, k2 = jax.random.split(key)

    # Small NCHW image batch consistent with the module's forward().
    N, C, H, W = 2, 4, 16, 16
    img = jax.random.normal(k1, (N, C, H, W), dtype=jnp.float32)

    out = jax.block_until_ready(tv_loss(img, tv_weight=1.0))
    ref = tv_loss_ref(img, tv_weight=1.0)
    assert out.shape == (N,), (out.shape, (N,))
    assert jnp.allclose(out, ref, rtol=1e-4, atol=1e-4), (out, ref)

    # Odd spatial size + RGB: exercises lane padding and the TC == C block path.
    img2 = jax.random.normal(k2, (2, 3, 5, 7), dtype=jnp.float32)
    out2 = jax.block_until_ready(tv_loss(img2, tv_weight=0.5))
    ref2 = tv_loss_ref(img2, tv_weight=0.5)
    assert jnp.allclose(out2, ref2, rtol=1e-4, atol=1e-4), (out2, ref2)

    print("KERNEL_OK")
</pallas_src>

<mosaic_0001>
module attributes {stable_mosaic.version = 11 : i64} {
  func.func @_tv_loss_kernel(%arg0: i32, %arg1: i32, %arg2: memref<1x4x256xf32, #tpu.memory_space<vmem>>, %arg3: memref<2x256xf32, #tpu.memory_space<vmem>>, %arg4: memref<1x1x1x128xf32, #tpu.memory_space<vmem>>) attributes {dimension_semantics = [#tpu.dimension_semantics<parallel>, #tpu.dimension_semantics<arbitrary>], iteration_bounds = array<i64: 2, 1>, scalar_prefetch = 0 : i64, scratch_operands = 0 : i64, tpu.core_type = #tpu.core_type<tc>, window_params = [{transform_indices = @transform_0, window_bounds = array<i64: 1, 4, 256>}, {pipeline_mode = #tpu.pipeline_mode<synchronous>, transform_indices = @transform_1, window_bounds = array<i64: 2, 256>}, {transform_indices = @transform_2, window_bounds = array<i64: 1, 1, 1, 128>}]} {
    %c0 = arith.constant 0 : index
    %c0_0 = arith.constant 0 : index
    %c0_1 = arith.constant 0 : index
    %0 = vector.load %arg2[%c0, %c0_0, %c0_1] : memref<1x4x256xf32, #tpu.memory_space<vmem>>, vector<1x4x256xf32>
    %1 = vector.shape_cast %0 : vector<1x4x256xf32> to vector<4x256xf32>
    %c255_i32 = arith.constant 255 : i32
    %2 = tpu.dynamic_rotate %1 by %c255_i32 dim 1 : vector<4x256xf32>, i32 -> vector<4x256xf32>
    %c240_i32 = arith.constant 240 : i32
    %3 = tpu.dynamic_rotate %1 by %c240_i32 dim 1 : vector<4x256xf32>, i32 -> vector<4x256xf32>
    %4 = arith.subf %1, %2 : vector<4x256xf32>
    %5 = arith.subf %1, %3 : vector<4x256xf32>
    %c0_2 = arith.constant 0 : index
    %c0_3 = arith.constant 0 : index
    %6 = vector.load %arg3[%c0_2, %c0_3] : memref<2x256xf32, #tpu.memory_space<vmem>>, vector<2x256xf32>
    %7 = arith.mulf %4, %4 : vector<4x256xf32>
    %8 = vector.extract_strided_slice %6 {offsets = [0, 0], sizes = [1, 256], strides = [1, 1]} : vector<2x256xf32> to vector<1x256xf32>
    %9 = vector.broadcast %8 : vector<1x256xf32> to vector<4x256xf32>
    %10 = arith.mulf %7, %9 : vector<4x256xf32>
    %11 = arith.mulf %5, %5 : vector<4x256xf32>
    %12 = vector.extract_strided_slice %6 {offsets = [1, 0], sizes = [1, 256], strides = [1, 1]} : vector<2x256xf32> to vector<1x256xf32>
    %13 = vector.broadcast %12 : vector<1x256xf32> to vector<4x256xf32>
    %14 = arith.mulf %11, %13 : vector<4x256xf32>
    %15 = arith.addf %10, %14 : vector<4x256xf32>
    %16 = vector.shape_cast %15 : vector<4x256xf32> to vector<1x4x256xf32>
    %cst = arith.constant dense<0.000000e+00> : vector<1xf32>
    %17 = vector.multi_reduction <add>, %16, %cst [1, 2] : vector<1x4x256xf32> to vector<1xf32>
    %18 = vector.shape_cast %17 : vector<1xf32> to vector<1x1x1xf32>
    %19 = vector.extract %18[0, 0, 0] : f32 from vector<1x1x1xf32>
    %20 = vector.broadcast %19 : f32 to vector<1x128xf32>
    %c0_i32 = arith.constant 0 : i32
    %21 = arith.cmpi eq, %arg1, %c0_i32 : i32
    %22 = arith.extui %21 : i1 to i32
    %c0_i32_4 = arith.constant 0 : i32
    %23 = arith.cmpi ne, %22, %c0_i32_4 : i32
    scf.if %23 {
      %cst_13 = arith.constant 0.000000e+00 : f32
      %30 = vector.broadcast %cst_13 : f32 to vector<1x128xf32>
      %c0_14 = arith.constant 0 : index
      %c0_15 = arith.constant 0 : index
      %c0_16 = arith.constant 0 : index
      %c0_17 = arith.constant 0 : index
      %31 = vector.load %arg4[%c0_14, %c0_15, %c0_16, %c0_17] : memref<1x1x1x128xf32, #tpu.memory_space<vmem>>, vector<1x1x1x128xf32>
      %32 = vector.shape_cast %31 : vector<1x1x1x128xf32> to vector<1x128xf32>
      %33 = vector.shape_cast %30 : vector<1x128xf32> to vector<1x1x1x128xf32>
      tpu.vector_store %arg4[%c0_14, %c0_15, %c0_16, %c0_17], %33 {strides = array<i32>} : memref<1x1x1x128xf32, #tpu.memory_space<vmem>>, vector<1x1x1x128xf32>,
    } else {
    }
    %c0_5 = arith.constant 0 : index
    %c0_6 = arith.constant 0 : index
    %c0_7 = arith.constant 0 : index
    %c0_8 = arith.constant 0 : index
    %24 = vector.load %arg4[%c0_5, %c0_6, %c0_7, %c0_8] : memref<1x1x1x128xf32, #tpu.memory_space<vmem>>, vector<1x1x1x128xf32>
    %25 = vector.shape_cast %24 : vector<1x1x1x128xf32> to vector<1x128xf32>
    %26 = arith.addf %25, %20 : vector<1x128xf32>
    %c0_9 = arith.constant 0 : index
    %c0_10 = arith.constant 0 : index
    %c0_11 = arith.constant 0 : index
    %c0_12 = arith.constant 0 : index
    %27 = vector.load %arg4[%c0_9, %c0_10, %c0_11, %c0_12] : memref<1x1x1x128xf32, #tpu.memory_space<vmem>>, vector<1x1x1x128xf32>
    %28 = vector.shape_cast %27 : vector<1x1x1x128xf32> to vector<1x128xf32>
    %29 = vector.shape_cast %26 : vector<1x128xf32> to vector<1x1x1x128xf32>
    tpu.vector_store %arg4[%c0_9, %c0_10, %c0_11, %c0_12], %29 {strides = array<i32>} : memref<1x1x1x128xf32, #tpu.memory_space<vmem>>, vector<1x1x1x128xf32>,
    return
  }
  func.func @transform_0(%arg0: i32, %arg1: i32) -> (i32, i32, i32) {
    %c0_i32 = arith.constant 0 : i32
    %c0_i32_0 = arith.constant 0 : i32
    return %arg0, %arg1, %c0_i32 : i32, i32, i32
  }
  func.func @transform_1(%arg0: i32, %arg1: i32) -> (i32, i32) {
    %c0_i32 = arith.constant 0 : i32
    %c0_i32_0 = arith.constant 0 : i32
    %c0_i32_1 = arith.constant 0 : i32
    return %c0_i32, %c0_i32_0 : i32, i32
  }
  func.func @transform_2(%arg0: i32, %arg1: i32) -> (i32, i32, i32, i32) {
    %c0_i32 = arith.constant 0 : i32
    %c0_i32_0 = arith.constant 0 : i32
    %c0_i32_1 = arith.constant 0 : i32
    %c0_i32_2 = arith.constant 0 : i32
    return %arg0, %c0_i32, %c0_i32_0, %c0_i32_1 : i32, i32, i32, i32
  }
}

</mosaic_0001>

<llo_original>
// kernel: tpu_custom_call.1
$region0: #{tpu_custom_call.1}
  #allocation0 [shape = 'u32[]', space=smem, size = 0x4, offset = 0x4, fixed_abs, tag = 'smem constant byte address 0x4 - core index']
  #allocation1 [shape = 'u32[144,128]{1,0:T(1,128)}', space=vmem, size = 0x12000, scoped, tag = 'internal scratch']
  %s0 = inlined_call_operand.hbm [shape: f32[2,4,256], index: 0, kind: input, shape index: {}]
  %s1 = inlined_call_operand.hbm [shape: f32[2,256], index: 1, kind: input, shape index: {}]
  %s2 = inlined_call_operand.hbm [shape: f32[2,1,1,128], index: 2, kind: output, shape index: {}]
  %s3 = sld [smem:[#allocation0]]
  $region53: #{tpu_custom_call.1} parent=0
    _
  %s5 = ssub.s32 1, %s3
  %s6 = scalar_select 0, %s5, %s3
  $region1: #{tpu_custom_call.1} parent=0
    #allocation2 [shape = 'u8[8192]{0}', space=vmem, size = 0x2000, scoped, tag = 'input window, operand 0']
    #allocation3 [shape = 's32[2]{0}', space=sflag, size = 0x8, scoped, tag = 'scoped memory for tpu_custom_call.1']
    #allocation4 [shape = 's32[2]{0}', space=sflag, size = 0x8, scoped, tag = 'scoped memory for tpu_custom_call.1']
    #allocation5 [shape = 'u8[2048]{0}', space=vmem, size = 0x800, scoped, tag = 'input window, operand 1, single buffered']
    #allocation6 [shape = 's32[1]{0}', space=sflag, size = 0x4, scoped, tag = 'scoped memory for tpu_custom_call.1']
    #allocation7 [shape = 'u8[1024]{0}', space=vmem, size = 0x400, scoped, tag = 'output window, operand 0']
    %7 = vsyncpa [#allocation3], 0
    %s8 = scalar_lea.sflag [#allocation3], 1
    %9 = vsyncpa %s8, 0
    %10 = vsyncpa [#allocation6], 0
    %11 = vsyncpa [#allocation4], 0
    %s12 = scalar_lea.sflag [#allocation4], 1
    %13 = vsyncpa %s12, 0
    loop: start=0, step=1, limit=4
    $region2: #{tpu_custom_call.1} parent=1 // loop_pre_header
      _
    $region3: #{tpu_custom_call.1} parent=1 // loop_header
      %s15 = sphi 0, %s19
      %p16 = scmp.ge.s32.totalorder %s15, 4
      %s22 = sphi 0, %s34
      %s23 = sphi 0, %s30
      %s24 = sphi 0, %s22
      %s25 = sphi 0, %s23
      %s26 = sphi 0, %s24
      %s27 = sphi 0, %s25
      %s39 = sphi 0, %s41
      %s42 = sphi 0, %s39
      %s43 = sphi 0, %s42
      %s59 = sphi 0, %s43
      %s63 = sphi 0, %s63
      %s65 = sphi 0, %s63
      %s66 = sphi 0, %s65
      %s80 = sphi 0, %s66
      %s86 = sphi 0, %s88
      %s89 = sphi 0, %s86
      %s90 = sphi 0, %s89
      %s106 = sphi 0, %s90
    $region4: #{tpu_custom_call.1} parent=1 // loop_header_branch
      %18 = sbr.rel (%p16) target = $region8
    $region5: #{tpu_custom_call.1} parent=1 // loop_body
      %s20 = ssub.s32 %s15, 1
      %s21 = ssub.s32 %s15, 2
      %s28 = sadd.s32 1, %s23
      %p29 = scmp.ge.s32.totalorder %s28, 1
      %s30 = scalar_select %p29, 0, %s28
      %s31 = sadd.s32 1, %s22
      %s32 = scalar_select %p29, %s31, %s22
      %p33 = scmp.ge.s32.totalorder %s32, 2
      %s34 = scalar_select %p33, 0, %s32
      %s35 = ssub.s32 %s22, %s34
      %s36 = ssub.s32 %s23, %s30
      %s37 = sor.u32 %s35, %s36
      %p38 = scmp.eq.s32.totalorder %s37, 0
      %s40 = sadd.s32 %s39, 1
      %s41 = scalar_select %p38, %s39, %s40
      %p44 = pneg %p38
      %p45 = scmp.eq.s32.totalorder %s15, 1
      %p46 = por %p44, %p45
      %p47 = scmp.ne.s32.totalorder %s39, %s42
      %p48 = scmp.eq.s32.totalorder %s15, 0
      %p49 = por %p47, %p48
      %p50 = scmp.ne.s32.totalorder %s39, %s42
      %p51 = scmp.eq.s32.totalorder %s20, 1
      %p52 = por %p50, %p51
      %p53 = scmp.ne.s32.totalorder %s42, %s43
      %p54 = scmp.eq.s32.totalorder %s20, 0
      %p55 = por %p53, %p54
      %p56 = scmp.ne.s32.totalorder %s42, %s43
      %p57 = scmp.eq.s32.totalorder %s21, 1
      %p58 = por %p56, %p57
      %p60 = scmp.ne.s32.totalorder %s43, %s59
      %p61 = scmp.eq.s32.totalorder %s21, 0
      %p62 = por %p60, %p61
      %s64 = sadd.s32 %s63, 1
      %p67 = scmp.eq.s32.totalorder %s15, 1
      %p68 = scmp.ne.s32.totalorder %s63, %s65
      %p69 = scmp.eq.s32.totalorder %s15, 0
      %p70 = por %p68, %p69
      %p71 = scmp.ne.s32.totalorder %s63, %s65
      %p72 = scmp.eq.s32.totalorder %s20, 1
      %p73 = por %p71, %p72
      %p74 = scmp.ne.s32.totalorder %s65, %s66
      %p75 = scmp.eq.s32.totalorder %s20, 0
      %p76 = por %p74, %p75
      %p77 = scmp.ne.s32.totalorder %s65, %s66
      %p78 = scmp.eq.s32.totalorder %s21, 1
      %p79 = por %p77, %p78
      %p81 = scmp.ne.s32.totalorder %s66, %s80
      %p82 = scmp.eq.s32.totalorder %s21, 0
      %p83 = por %p81, %p82
      %s84 = ssub.s32 %s22, %s34
      %p85 = scmp.eq.s32.totalorder %s84, 0
      %s87 = sadd.s32 %s86, 1
      %s88 = scalar_select %p85, %s86, %s87
      %p91 = pneg %p85
      %p92 = scmp.eq.s32.totalorder %s15, 1
      %p93 = por %p91, %p92
      %p94 = scmp.ne.s32.totalorder %s86, %s89
      %p95 = scmp.eq.s32.totalorder %s15, 0
      %p96 = por %p94, %p95
      %p97 = scmp.ne.s32.totalorder %s86, %s89
      %p98 = scmp.eq.s32.totalorder %s20, 1
      %p99 = por %p97, %p98
      %p100 = scmp.ne.s32.totalorder %s89, %s90
      %p101 = scmp.eq.s32.totalorder %s20, 0
      %p102 = por %p100, %p101
      %p103 = scmp.ne.s32.totalorder %s89, %s90
      %p104 = scmp.eq.s32.totalorder %s21, 1
      %p105 = por %p103, %p104
      %p107 = scmp.ne.s32.totalorder %s90, %s106
      %p108 = scmp.eq.s32.totalorder %s21, 0
      %p109 = por %p107, %p108
      %p110 = scmp.le.s32.totalorder 1, %s15
      %p111 = scmp.lt.s32.totalorder %s15, 3
      %p112 = pnand %p110, %p111
      %p113 = pneg %p112
      // Predicated region
      $region9: #{tpu_custom_call.1} parent=5 // pred_check
        _
      $region10: #{tpu_custom_call.1} parent=5 // pred_check_branch
        %115 = sbr.rel (%p112) target = $region12
      $region11: #{tpu_custom_call.1} parent=5 // pred_region
        %s116 = ssub.s32 %s15, 1
        // Predicated region
        $region13: #{tpu_custom_call.1} parent=11 // pred_check
          %p117 = pneg %p76
        $region14: #{tpu_custom_call.1} parent=11 // pred_check_branch
          %119 = sbr.rel (%p117) target = $region16
        $region15: #{tpu_custom_call.1} parent=11 // pred_region
          %s121 = ssub.s32 64, 64
          %122 = vsyncadd [#allocation6], %s121
          %s124 = sshll.u32 [#allocation5], 4
          %s125 = int_to_ptr.vmem [resolvable:$true] %s124
          %127 = dma.hbm_to_vmem [thread:$0]  %s1, 64, %s125, [#allocation6]
        $region16: #{tpu_custom_call.1} parent=11 // pred_fallthru
          _
      $region12: #{tpu_custom_call.1} parent=5 // pred_fallthru
        _
      %p128 = scmp.lt.s32.totalorder %s15, 2
      // Predicated region
      $region17: #{tpu_custom_call.1} parent=5 // pred_check
        %p129 = pneg %p128
      $region18: #{tpu_custom_call.1} parent=5 // pred_check_branch
        %131 = sbr.rel (%p129) target = $region20
      $region19: #{tpu_custom_call.1} parent=5 // pred_region
        // Predicated region
        $region21: #{tpu_custom_call.1} parent=19 // pred_check
          %p132 = pneg %p49
        $region22: #{tpu_custom_call.1} parent=19 // pred_check_branch
          %134 = sbr.rel (%p132) target = $region24
        $region23: #{tpu_custom_call.1} parent=19 // pred_region
          %s135 = sand.u32 %s39, 1
          %s136 = scalar_lea.sflag [#allocation3], %s135
          %s137 = sand.u32 %s39, 1
          %s138 = smul.addr %s137, 8
          %s139 = scalar_lea.vmem [#allocation2], %s138
          %s141 = ssub.s32 128, 128
          %142 = vsyncadd %s136, %s141
          %s143 = smul.addr %s23, 2
          %s144 = smul.addr %s22, 2
          %s145 = sadd.s32 %s143, %s144
          %s146 = smul.addr %s145, 64
          %s147 = scalar_lea.hbm %s0, %s146
          %s149 = sshll.u32 %s139, 4
          %s150 = int_to_ptr.vmem [resolvable:$true] %s149
          %152 = dma.hbm_to_vmem [thread:$0]  %s147, 128, %s150, %s136
        $region24: #{tpu_custom_call.1} parent=19 // pred_fallthru
          _
      $region20: #{tpu_custom_call.1} parent=5 // pred_fallthru
        _
      %p153 = scmp.le.s32.totalorder 1, %s15
      %p154 = scmp.lt.s32.totalorder %s15, 3
      %p155 = pnand %p153, %p154
      %p156 = pneg %p155
      // Predicated region
      $region25: #{tpu_custom_call.1} parent=5 // pred_check
        _
      $region26: #{tpu_custom_call.1} parent=5 // pred_check_branch
        %158 = sbr.rel (%p155) target = $region28
      $region27: #{tpu_custom_call.1} parent=5 // pred_region
        %s159 = ssub.s32 %s15, 1
        %s160 = sand.u32 %s42, 1
        %s161 = scalar_lea.sflag [#allocation3], %s160
        %s162 = sand.u32 %s42, 1
        %s163 = smul.addr %s162, 8
        %s164 = scalar_lea.vmem [#allocation2], %s163
        // Predicated region
        $region29: #{tpu_custom_call.1} parent=27 // pred_check
          %p165 = pneg %p55
        $region30: #{tpu_custom_call.1} parent=27 // pred_check_branch
          %167 = sbr.rel (%p165) target = $region32
        $region31: #{tpu_custom_call.1} parent=27 // pred_region
          %168 = dma.done %s161, 128
        $region32: #{tpu_custom_call.1} parent=27 // pred_fallthru
          _
        // Predicated region
        $region33: #{tpu_custom_call.1} parent=27 // pred_check
          %p169 = pneg %p76
        $region34: #{tpu_custom_call.1} parent=27 // pred_check_branch
          %171 = sbr.rel (%p169) target = $region36
        $region35: #{tpu_custom_call.1} parent=27 // pred_region
          %172 = dma.done [#allocation6], 64
        $region36: #{tpu_custom_call.1} parent=27 // pred_fallthru
          _
        %s173 = sand.u32 %s42, 1
        %s174 = scalar_lea.sflag [#allocation3], %s173
        %s175 = sand.u32 %s42, 1
        %s176 = smul.addr %s175, 8
        %s177 = scalar_lea.vmem [#allocation2], %s176
        %p178 = pneg %p55
        %p179 = pneg %p52
        %p180 = pneg %p76
        %p181 = pneg %p73
        %p182 = pneg %p102
        %p183 = pneg %p99
        %s184 = sand.u32 %s89, 1
        %s185 = scalar_lea.sflag [#allocation4], %s184
        %s186 = sand.u32 %s89, 1
        %s187 = scalar_lea.vmem [#allocation7], %s186
        %v188 = vld [vmem:[%s164] sm:$0xff]
        %v190 = vcombine.high %v188, %v188
        %192 = vrot.lane.b32.xlu0 %v188, 127
        %v193 = vpop.permute.xlu0 %192
        %194 = vrot.lane.b32.xlu0 %v190, 127
        %v195 = vpop.permute.xlu0 %194
        %v196 = vlaneseq
        %v197 = vand.u32 %v196, 127
        %vm198 = vcmp.lt.s32.totalorder %v197, 127
        %v199 = vsel %vm198, %v193, %v195
        %v200 = vsel %vm198, %v195, %v193
        %201 = vrot.lane.b32.xlu0 %v188, 112
        %v202 = vpop.permute.xlu0 %201
        %203 = vrot.lane.b32.xlu0 %v190, 112
        %v204 = vpop.permute.xlu0 %203
        %vm205 = vcmp.lt.s32.totalorder %v197, 112
        %v206 = vsel %vm205, %v202, %v204
        %v207 = vsel %vm205, %v204, %v202
        %v210 = vcombine.low %v199, %v200
        %v212 = vsub.f32 %v188, %v210
        %v215 = vcombine.low %v206, %v207
        %v217 = vsub.f32 %v188, %v215
        %v218 = vld [vmem:[#allocation5] sm:$0xf]
        %v219 = vmul.f32 %v212, %v212
        %v221 = vlaneseq
        %v222 = vshrl.u32 %v221, 7
        %v223 = vsub.s32 0, %v222
        %v224 = vrot.slane %v218, %v223
        %v225 = vlaneseq
        %v226 = vshrl.u32 %v225, 7
        %v227 = vsub.s32 2, %v226
        %v228 = vrot.slane %v218, %v227
        %v231 = vlaneseq
        %v232 = vshrl.u32 %v231, 7
        %v233 = vsub.s32 0, %v232
        %v234 = vrot.slane %v224, %v233
        %v235 = vlaneseq
        %v236 = vshrl.u32 %v235, 7
        %v237 = vsub.s32 0, %v236
        %v238 = vrot.slane %v228, %v237
        %v241 = vcombine.low %v234, %v238
        %v243 = vmul.f32 %v219, %v241
        %v244 = vmul.f32 %v217, %v217
        %v245 = vlaneseq
        %v246 = vshrl.u32 %v245, 7
        %v247 = vsub.s32 1, %v246
        %v248 = vrot.slane %v218, %v247
        %v249 = vlaneseq
        %v250 = vshrl.u32 %v249, 7
        %v251 = vsub.s32 3, %v250
        %v252 = vrot.slane %v218, %v251
        %v255 = vlaneseq
        %v256 = vshrl.u32 %v255, 7
        %v257 = vsub.s32 1, %v256
        %v258 = vrot.slane %v248, %v257
        %v259 = vlaneseq
        %v260 = vshrl.u32 %v259, 7
        %v261 = vsub.s32 1, %v260
        %v262 = vrot.slane %v252, %v261
        %v265 = vcombine.low %v258, %v262
        %v267 = vmul.f32 %v244, %v265
        %v268 = vadd.f32 %v243, %v267
        %v270 = vcombine.high %v268, %v268
        %vm272 = vcmask 1043456
        %v273 = vsel %vm272, %v268, 0.0
        %v274 = vsel %vm272, %v270, 0.0
        %v275 = vadd.f32 %v273, %v274
        %276 = vadd.xlane.f32.xlu0 %v275
        %v277 = vpop.xlane.xlu0 %276
        %v278 = vrot.slane %v277, 4
        %v279 = vadd.f32 %v277, %v278
        %v280 = vrot.slane %v279, 2
        %v281 = vadd.f32 %v279, %v280
        %v282 = vrot.slane %v281, 1
        %v283 = vadd.f32 %v281, %v282
        %s284 = vtos %v283
        %v285 = vstv %s284
        %p286 = scmp.eq.s32.totalorder %s25, 0
        // Predicated region
        $region37: #{tpu_custom_call.1} parent=27 // pred_check
          %p287 = pneg %p286
        $region38: #{tpu_custom_call.1} parent=27 // pred_check_branch
          %289 = sbr.rel (%p287) target = $region40
        $region39: #{tpu_custom_call.1} parent=27 // pred_region
          %290 = vst [vmem:[%s187] sm:$0x1] 0.0
        $region40: #{tpu_custom_call.1} parent=27 // pred_fallthru
          _
        %v291 = vld [vmem:[%s187] sm:$0x1]
        %v292 = vadd.f32 %v291, %v285
        %293 = vst [vmem:[%s187] sm:$0x1] %v292
        %s294 = sand.u32 %s89, 1
        %s295 = scalar_lea.sflag [#allocation4], %s294
        %s296 = sand.u32 %s89, 1
        %s297 = scalar_lea.vmem [#allocation7], %s296
        // Predicated region
        $region41: #{tpu_custom_call.1} parent=27 // pred_check
          %p298 = pneg %p99
        $region42: #{tpu_custom_call.1} parent=27 // pred_check_branch
          %300 = sbr.rel (%p298) target = $region44
        $region43: #{tpu_custom_call.1} parent=27 // pred_region
          %s302 = ssub.s32 16, 16
          %303 = vsyncadd %s295, %s302
          %s304 = smul.addr %s24, 16
          %s305 = scalar_lea.hbm %s2, %s304
          %s307 = sshll.u32 %s297, 4
          %s308 = int_to_ptr.vmem [resolvable:$true] %s307
          %310 = dma.vmem_to_hbm [thread:$0]  %s308, 16, %s305, %s295
        $region44: #{tpu_custom_call.1} parent=27 // pred_fallthru
          _
      $region28: #{tpu_custom_call.1} parent=5 // pred_fallthru
        _
      %p311 = scmp.le.s32.totalorder 2, %s15
      // Predicated region
      $region45: #{tpu_custom_call.1} parent=5 // pred_check
        %p312 = pneg %p311
      $region46: #{tpu_custom_call.1} parent=5 // pred_check_branch
        %314 = sbr.rel (%p312) target = $region48
      $region47: #{tpu_custom_call.1} parent=5 // pred_region
        %s315 = ssub.s32 %s15, 2
        // Predicated region
        $region49: #{tpu_custom_call.1} parent=47 // pred_check
          %p316 = pneg %p105
        $region50: #{tpu_custom_call.1} parent=47 // pred_check_branch
          %318 = sbr.rel (%p316) target = $region52
        $region51: #{tpu_custom_call.1} parent=47 // pred_region
          %s319 = sand.u32 %s90, 1
          %s320 = scalar_lea.sflag [#allocation4], %s319
          %s321 = sand.u32 %s90, 1
          %s322 = scalar_lea.vmem [#allocation7], %s321
          %323 = dma.done %s320, 16
        $region52: #{tpu_custom_call.1} parent=47 // pred_fallthru
          _
      $region48: #{tpu_custom_call.1} parent=5 // pred_fallthru
        _
    $region6: #{tpu_custom_call.1} parent=1 // loop_footer
      %s19 = sadd.s32 1, %s15
    $region7: #{tpu_custom_call.1} parent=1 // loop_footer_branch
      %14 = sbr.rel target = $region3
    $region8: #{tpu_custom_call.1} parent=1 // loop_exit
      _
    %324 = vsyncpa [#allocation3], 1
    %s325 = scalar_lea.sflag [#allocation3], 1
    %326 = vsyncpa %s325, 1
    %327 = vsyncpa [#allocation6], 1
    %328 = vsyncpa [#allocation4], 1
    %s329 = scalar_lea.sflag [#allocation4], 1
    %330 = vsyncpa %s329, 1

</llo_original>
